<compile_context>
chip_gen: v6e
topology: v6e:2x2x1
jax: 0.10.0
libtpu: 0.0.40
codegen_flags: <defaults>
</compile_context>

<pallas_src>
import functools
import numpy as np
import jax
import jax.numpy as jnp
from jax.experimental import pallas as pl
from jax.experimental.pallas import tpu as pltpu

# Synthetic input vocabulary (digits + ops + 3 special tokens at the END, as
# required by the module: start = V-3, end = V-2, null = V-1).
INP_VOCAB = [str(d) for d in range(10)] + ["+", "*", "=", "<s>", "</s>", "<null>"]
V = len(INP_VOCAB)          # 16
EMB_DIM = 32
LANES = 128

# Tuning knobs (from the perf review).
MAX_TILE_G = 1024                  # packed rows / grid step -> 512 KiB out/step
MIN_GRID_STEPS = 2                 # >= 2 parallel steps so both v7x TCs get work
PALLAS_MIN_OUT_BYTES = 256 * 1024  # below this a fused XLA gather wins (launch
                                   # + pipeline prologue dominates the kernel)


def _round_up(x, m):
    return ((x + m - 1) // m) * m


def _embed_pack_kernel(gid_ref, emb_ref, out_ref, *, npack, vocab, bits):
    """Lane-packed one-hot embedding gather on the MXU.

    gid_ref : (TG, 1)    int32  bit-packed ids (npack fields of `bits` bits)
    emb_ref : (K, 128)   f32    block-diagonal replicated embedding table
    out_ref : (TG, 128)         npack consecutive original rows per output row
    """
    tg = gid_ref.shape[0]
    k = emb_ref.shape[0]
    packed = gid_ref[...]                                         # (TG, 1)
    lane = jax.lax.broadcasted_iota(jnp.int32, (tg, k), 1)        # (TG, K)
    mask = (1 << bits) - 1
    onehot = jnp.zeros((tg, k), jnp.float32)
    for r in range(npack):                                        # static, P=4
        idr = ((packed >> (bits * r)) & mask) + r * vocab         # (TG, 1)
        onehot = onehot + (idr == lane).astype(jnp.float32)
    # f32 x f32 MXU matmul; Mosaic's f32 path keeps the selected embedding
    # values exact (verified against the reference at rtol=1e-5 in __main__).
    out_ref[...] = jnp.dot(onehot, emb_ref[...],
                           preferred_element_type=jnp.float32
                           ).astype(out_ref.dtype)                # (TG, 128)


def embedding_in_forward(src, src_len, emb, *, max_len,
                         out_dtype=jnp.float32,
                         return_packed=False,
                         force_pallas=False):
    """Pallas implementation of EmbeddingIn.forward (non-image path).

    `max_len` is a static Python int (must equal the batch max(src_len) to
    match the PyTorch semantics), so the whole function is jit-able.
    """
    src = src.astype(jnp.int32)
    src_len = src_len.astype(jnp.int32)
    B = src_len.shape[0]
    total = src.shape[0]
    L = max_len + 2
    vocab, E = emb.shape
    assert LANES % E == 0, "lane-packing requires emb_dim dividing 128"
    # TODO(synk): for emb_dim not dividing 128 fall back to an unpacked layout.
    P = LANES // E                       # rows packed per 128-lane output row
    start_id, end_id, null_id = vocab - 3, vocab - 2, vocab - 1

    # --- plain-JAX glue: per-(batch, position) token-id selection ----------
    #   p == 0            -> <start>
    #   1 <= p <= l       -> original token
    #   p == l + 1        -> <end>
    #   otherwise         -> <null>
    off = jnp.concatenate([jnp.zeros((1,), jnp.int32),
                           jnp.cumsum(src_len)[:-1].astype(jnp.int32)])   # (B,)
    pos = jnp.arange(L, dtype=jnp.int32)[None, :]                          # (1, L)
    lens = src_len[:, None]                                                # (B, 1)
    # NOTE: the clipped gather reads arbitrary src entries for pos==0 and
    # pos>len positions; those are overwritten by the where-chain below.
    gidx = jnp.clip(off[:, None] + pos - 1, 0, total - 1)                  # (B, L)
    interior = src[gidx]                                                   # (B, L)
    ids = jnp.where(pos == 0, start_id,
          jnp.where(pos <= lens, interior,
          jnp.where(pos == lens + 1, end_id, null_id))).astype(jnp.int32)  # (B, L)

    N = B * L
    out_bytes = N * E * jnp.dtype(out_dtype).itemsize
    if (not force_pallas and not return_packed
            and out_bytes < PALLAS_MIN_OUT_BYTES):
        # Tiny problem: the pallas_call fixed cost dominates -> fused XLA gather.
        return jnp.take(emb.astype(out_dtype), ids, axis=0), src_len + 2

    # --- lane packing: fold P consecutive rows into one 128-wide row -------
    G = pl.cdiv(N, P)                                    # packed rows
    # Big tiles amortize the per-step overhead; keep >= MIN_GRID_STEPS steps so
    # the "parallel" grid axis can be sharded across v7x's 2 TensorCores.
    tile_g = min(MAX_TILE_G, max(8, _round_up(pl.cdiv(G, MIN_GRID_STEPS), 8)))
    G_pad = _round_up(G, tile_g)

    # Bit-pack the P ids of each output row into one int32 (4 B / output row)
    # instead of a lane-sparse (G, P) int32 side input.
    bits = max(1, int(vocab - 1).bit_length())
    assert P * bits <= 31, "packed ids must fit an int32 without the sign bit"
    ids_flat = jnp.pad(ids.reshape(-1), (0, G_pad * P - N),
                       constant_values=null_id)          # tail rows -> <null>
    shifts = (jnp.arange(P, dtype=jnp.int32) * bits)[None, :]              # (1, P)
    gid = jnp.sum(ids_flat.reshape(G_pad, P) << shifts, axis=1,
                  keepdims=True).astype(jnp.int32)                         # (G_pad, 1)

    # Block-diagonal replicated embedding; contraction K padded to 128.
    K = max(LANES, _round_up(P * vocab, LANES))
    big_emb = jnp.zeros((K, P * E), jnp.float32)
    for r in range(P):
        big_emb = big_emb.at[r * vocab:(r + 1) * vocab,
                             r * E:(r + 1) * E].set(emb.astype(jnp.float32))

    # --- Pallas kernel: lane-dense one-hot gather on the MXU ---------------
    out = pl.pallas_call(
        functools.partial(_embed_pack_kernel, npack=P, vocab=vocab, bits=bits),
        out_shape=jax.ShapeDtypeStruct((G_pad, P * E), out_dtype),
        grid=(G_pad // tile_g,),
        in_specs=[pl.BlockSpec((tile_g, 1), lambda i: (i, 0)),
                  pl.BlockSpec((K, P * E), lambda i: (0, 0))],   # stays resident
        out_specs=pl.BlockSpec((tile_g, P * E), lambda i: (i, 0)),
        compiler_params=pltpu.CompilerParams(
            dimension_semantics=("parallel",)),
    )(gid, big_emb)

    if return_packed:
        # Lane-dense (G_pad, 128) layout: output row g holds original rows
        # g*P .. g*P+P-1 (row-major over (B, L)). Hand this straight to a
        # downstream Pallas consumer's in_spec to skip the relayout below.
        return out, src_len + 2

    # TODO(synk): this reshape to a 32-lane minor dim costs one extra XLA
    # relayout pass; fuse the unpack into the (unspecified) downstream model's
    # first kernel when that model is available (use return_packed=True).
    padded_src = out.reshape(G_pad * P, E)[:N].reshape(B, L, E)
    return padded_src, src_len + 2


def neural_arithmetic_forward(src, tgt, src_len, emb, *, max_len, **kwargs):
    padded_src, padded_len = embedding_in_forward(src, src_len, emb,
                                                  max_len=max_len, **kwargs)
    # TODO(synk): `self.model` (RNNModel / transformer.create_model) is not
    # defined in the provided source, so the downstream seq2seq model is not
    # reproduced; we return the embedded + padded encoder input instead.
    del tgt
    return padded_src, padded_len


def reference_embedding_in(src, src_len, emb):
    """Pure-numpy replica of the PyTorch EmbeddingIn.forward loop."""
    src = np.asarray(src)
    src_len = np.asarray(src_len)
    emb = np.asarray(emb)
    src_emb = emb[src]
    max_len = int(src_len.max())
    outs, cur = [], 0
    for l in src_len.tolist():
        parts = [emb[V - 3:V - 2], src_emb[cur:cur + l], emb[V - 2:V - 1]]
        parts += [emb[V - 1:V]] * (max_len - l)
        outs.append(np.concatenate(parts, axis=0))
        cur += l
    return np.stack(outs), src_len + 2


if __name__ == "__main__":
    key = jax.random.PRNGKey(0)
    k_emb, k_src1, k_src2, k_len = jax.random.split(key, 4)

    # config.embedding_init == 'pytorch' (model name has no 'scaledinit'/'opennmt')
    # -> nn.Embedding default init: N(0, 1).
    emb = jax.random.normal(k_emb, (V, EMB_DIM), dtype=jnp.float32)

    def run_case(src_len_np, k_src, force_pallas):
        src_len = jnp.asarray(src_len_np)
        total = int(src_len_np.sum())
        src = jax.random.randint(k_src, (total,), 0, V - 3, dtype=jnp.int32)
        max_len = int(src_len_np.max())     # static, host-side (no device sync)
        fwd = jax.jit(functools.partial(neural_arithmetic_forward,
                                        max_len=max_len,
                                        force_pallas=force_pallas))
        out, out_len = fwd(src, None, src_len, emb)
        out = jax.block_until_ready(out)
        ref, ref_len = reference_embedding_in(np.asarray(src), src_len_np,
                                              np.asarray(emb))
        np.testing.assert_allclose(np.asarray(out), ref, rtol=1e-5, atol=1e-5)
        np.testing.assert_array_equal(np.asarray(out_len), ref_len)

    # Small, module-consistent shapes (batch=2, seq<=8) — Pallas path forced.
    run_case(np.array([5, 3], dtype=np.int32), k_src1, force_pallas=True)
    # Slightly larger case exercising multiple grid steps + tail padding.
    lens2 = np.asarray(jax.random.randint(k_len, (16,), 1, 13)).astype(np.int32)
    run_case(lens2, k_src2, force_pallas=True)
    # Small-problem dispatch path (fused XLA gather fallback).
    run_case(np.array([5, 3], dtype=np.int32), k_src1, force_pallas=False)

    print("KERNEL_OK")
</pallas_src>

<mosaic_0001>
module attributes {stable_mosaic.version = 11 : i64} {
  func.func @_embed_pack_kernel(%arg0: i32, %arg1: memref<8x1xi32, #tpu.memory_space<vmem>>, %arg2: memref<128x128xf32, #tpu.memory_space<vmem>>, %arg3: memref<8x128xf32, #tpu.memory_space<vmem>>) attributes {dimension_semantics = [#tpu.dimension_semantics<parallel>], iteration_bounds = array<i64: 1>, scalar_prefetch = 0 : i64, scratch_operands = 0 : i64, tpu.core_type = #tpu.core_type<tc>, window_params = [{transform_indices = @transform_0, window_bounds = array<i64: 8, 1>}, {pipeline_mode = #tpu.pipeline_mode<synchronous>, transform_indices = @transform_1, window_bounds = array<i64: 128, 128>}, {transform_indices = @transform_2, window_bounds = array<i64: 8, 128>}]} {
    %c0 = arith.constant 0 : index
    %c0_0 = arith.constant 0 : index
    %0 = vector.load %arg1[%c0, %c0_0] : memref<8x1xi32, #tpu.memory_space<vmem>>, vector<8x1xi32>
    %1 = tpu.iota {dimensions = array<i32: 1>} : vector<8x128xi32>
    %cst = arith.constant 0.000000e+00 : f32
    %2 = vector.broadcast %cst : f32 to vector<8x128xf32>
    %c0_i32 = arith.constant 0 : i32
    %3 = vector.broadcast %c0_i32 : i32 to vector<8x1xi32>
    %4 = arith.shrsi %0, %3 : vector<8x1xi32>
    %c15_i32 = arith.constant 15 : i32
    %5 = vector.broadcast %c15_i32 : i32 to vector<8x1xi32>
    %6 = arith.andi %4, %5 : vector<8x1xi32>
    %c0_i32_1 = arith.constant 0 : i32
    %7 = vector.broadcast %c0_i32_1 : i32 to vector<8x1xi32>
    %8 = arith.addi %6, %7 : vector<8x1xi32>
    %9 = vector.broadcast %8 : vector<8x1xi32> to vector<8x128xi32>
    %10 = arith.cmpi eq, %9, %1 : vector<8x128xi32>
    %11 = arith.extui %10 : vector<8x128xi1> to vector<8x128xi32>
    %12 = arith.sitofp %11 : vector<8x128xi32> to vector<8x128xf32>
    %13 = arith.addf %2, %12 : vector<8x128xf32>
    %c4_i32 = arith.constant 4 : i32
    %14 = vector.broadcast %c4_i32 : i32 to vector<8x1xi32>
    %15 = arith.shrsi %0, %14 : vector<8x1xi32>
    %c15_i32_2 = arith.constant 15 : i32
    %16 = vector.broadcast %c15_i32_2 : i32 to vector<8x1xi32>
    %17 = arith.andi %15, %16 : vector<8x1xi32>
    %c16_i32 = arith.constant 16 : i32
    %18 = vector.broadcast %c16_i32 : i32 to vector<8x1xi32>
    %19 = arith.addi %17, %18 : vector<8x1xi32>
    %20 = vector.broadcast %19 : vector<8x1xi32> to vector<8x128xi32>
    %21 = arith.cmpi eq, %20, %1 : vector<8x128xi32>
    %22 = arith.extui %21 : vector<8x128xi1> to vector<8x128xi32>
    %23 = arith.sitofp %22 : vector<8x128xi32> to vector<8x128xf32>
    %24 = arith.addf %13, %23 : vector<8x128xf32>
    %c8_i32 = arith.constant 8 : i32
    %25 = vector.broadcast %c8_i32 : i32 to vector<8x1xi32>
    %26 = arith.shrsi %0, %25 : vector<8x1xi32>
    %c15_i32_3 = arith.constant 15 : i32
    %27 = vector.broadcast %c15_i32_3 : i32 to vector<8x1xi32>
    %28 = arith.andi %26, %27 : vector<8x1xi32>
    %c32_i32 = arith.constant 32 : i32
    %29 = vector.broadcast %c32_i32 : i32 to vector<8x1xi32>
    %30 = arith.addi %28, %29 : vector<8x1xi32>
    %31 = vector.broadcast %30 : vector<8x1xi32> to vector<8x128xi32>
    %32 = arith.cmpi eq, %31, %1 : vector<8x128xi32>
    %33 = arith.extui %32 : vector<8x128xi1> to vector<8x128xi32>
    %34 = arith.sitofp %33 : vector<8x128xi32> to vector<8x128xf32>
    %35 = arith.addf %24, %34 : vector<8x128xf32>
    %c12_i32 = arith.constant 12 : i32
    %36 = vector.broadcast %c12_i32 : i32 to vector<8x1xi32>
    %37 = arith.shrsi %0, %36 : vector<8x1xi32>
    %c15_i32_4 = arith.constant 15 : i32
    %38 = vector.broadcast %c15_i32_4 : i32 to vector<8x1xi32>
    %39 = arith.andi %37, %38 : vector<8x1xi32>
    %c48_i32 = arith.constant 48 : i32
    %40 = vector.broadcast %c48_i32 : i32 to vector<8x1xi32>
    %41 = arith.addi %39, %40 : vector<8x1xi32>
    %42 = vector.broadcast %41 : vector<8x1xi32> to vector<8x128xi32>
    %43 = arith.cmpi eq, %42, %1 : vector<8x128xi32>
    %44 = arith.extui %43 : vector<8x128xi1> to vector<8x128xi32>
    %45 = arith.sitofp %44 : vector<8x128xi32> to vector<8x128xf32>
    %46 = arith.addf %35, %45 : vector<8x128xf32>
    %c0_5 = arith.constant 0 : index
    %c0_6 = arith.constant 0 : index
    %47 = vector.load %arg2[%c0_5, %c0_6] : memref<128x128xf32, #tpu.memory_space<vmem>>, vector<128x128xf32>
    %cst_7 = arith.constant dense<0.000000e+00> : vector<8x128xf32>
    %48 = tpu.matmul %46, %47, %cst_7 {dimension_numbers = #tpu.dot_dimension_numbers<[1], [0], [0], [1], [0, 0, 1, 1], [], []>} : vector<8x128xf32>, vector<128x128xf32>, vector<8x128xf32> -> vector<8x128xf32>
    %c0_8 = arith.constant 0 : index
    %c0_9 = arith.constant 0 : index
    %49 = vector.load %arg3[%c0_8, %c0_9] : memref<8x128xf32, #tpu.memory_space<vmem>>, vector<8x128xf32>
    tpu.vector_store %arg3[%c0_8, %c0_9], %48 {strides = array<i32>} : memref<8x128xf32, #tpu.memory_space<vmem>>, vector<8x128xf32>,
    return
  }
  func.func @transform_0(%arg0: i32) -> (i32, i32) {
    %c0_i32 = arith.constant 0 : i32
    %c0_i32_0 = arith.constant 0 : i32
    return %arg0, %c0_i32 : i32, i32
  }
  func.func @transform_1(%arg0: i32) -> (i32, i32) {
    %c0_i32 = arith.constant 0 : i32
    %c0_i32_0 = arith.constant 0 : i32
    %c0_i32_1 = arith.constant 0 : i32
    return %c0_i32, %c0_i32_0 : i32, i32
  }
  func.func @transform_2(%arg0: i32) -> (i32, i32) {
    %c0_i32 = arith.constant 0 : i32
    %c0_i32_0 = arith.constant 0 : i32
    return %arg0, %c0_i32 : i32, i32
  }
}

</mosaic_0001>

<llo_original>
// kernel: neural_arithmetic_forward.1
$region0: #{neural_arithmetic_forward.1}
  #allocation0 [shape = 'u32[]', space=smem, size = 0x4, offset = 0x4, fixed_abs, tag = 'smem constant byte address 0x4 - core index']
  #allocation1 [shape = 'u32[144,128]{1,0:T(1,128)}', space=vmem, size = 0x12000, scoped, tag = 'internal scratch']
  %s0 = inlined_call_operand.vmem [shape: s32[8,1], index: 0, kind: input, shape index: {}]
  %s1 = inlined_call_operand.vmem [shape: f32[128,128], index: 1, kind: input, shape index: {}]
  %s2 = inlined_call_operand.vmem [shape: f32[8,128], index: 2, kind: output, shape index: {}]
  %s3 = sld [smem:[#allocation0]]
  $region18: #{neural_arithmetic_forward.1} parent=0
    _
  %s5 = ssub.s32 1, %s3
  %s6 = scalar_select 0, %s5, %s3
  // Predicated region
  $region2: #{neural_arithmetic_forward.1} parent=0 // pred_check
    _
  $region3: #{neural_arithmetic_forward.1} parent=0 // pred_check_branch
    %8 = sbr.rel (0) target = $region5
  $region4: #{neural_arithmetic_forward.1} parent=0 // pred_region
    _
  $region5: #{neural_arithmetic_forward.1} parent=0 // pred_fallthru
    _
  // Predicated region
  $region6: #{neural_arithmetic_forward.1} parent=0 // pred_check
    _
  $region7: #{neural_arithmetic_forward.1} parent=0 // pred_check_branch
    %10 = sbr.rel (0) target = $region9
  $region8: #{neural_arithmetic_forward.1} parent=0 // pred_region
    _
  $region9: #{neural_arithmetic_forward.1} parent=0 // pred_fallthru
    _
  %v11 = vld [vmem:[%s0] sm:$0xff]
  %v12 = vlaneseq
  %v13 = vand.u32 %v12, 127
  %v14 = vand.u32 %v11, 15
  %15 = vset.pattern.permute.xlu0 0
  %16 = vperm.xlu0 %15, %v14
  %v17 = vpop.permute.xlu0 %16
  %vm18 = vcmp.eq.s32.totalorder %v17, %v13
  %v19 = vsel %vm18, 1, 0
  %v20 = vcvt.s32.f32 %v19
  %v21 = vadd.f32 %v20, 0.0
  %v22 = vshra.s32 %v11, 4
  %v23 = vand.u32 %v22, 15
  %v24 = vadd.s32 %v23, 16
  %25 = vset.pattern.permute.xlu0 0
  %26 = vperm.xlu0 %25, %v24
  %v27 = vpop.permute.xlu0 %26
  %vm28 = vcmp.eq.s32.totalorder %v27, %v13
  %v29 = vsel %vm28, 1, 0
  %v30 = vcvt.s32.f32 %v29
  %v31 = vadd.f32 %v21, %v30
  %v32 = vshra.s32 %v11, 8
  %v33 = vand.u32 %v32, 15
  %v34 = vadd.s32 %v33, 32
  %35 = vset.pattern.permute.xlu0 0
  %36 = vperm.xlu0 %35, %v34
  %v37 = vpop.permute.xlu0 %36
  %vm38 = vcmp.eq.s32.totalorder %v37, %v13
  %v39 = vsel %vm38, 1, 0
  %v40 = vcvt.s32.f32 %v39
  %v41 = vadd.f32 %v31, %v40
  %v42 = vshra.s32 %v11, 12
  %v43 = vand.u32 %v42, 15
  %v44 = vadd.s32 %v43, 48
  %45 = vset.pattern.permute.xlu0 0
  %46 = vperm.xlu0 %45, %v44
  %v47 = vpop.permute.xlu0 %46
  %vm48 = vcmp.eq.s32.totalorder %v47, %v13
  %v49 = vsel %vm48, 1, 0
  %v50 = vcvt.s32.f32 %v49
  %v51 = vadd.f32 %v41, %v50
  %v52 = vld [vmem:[%s1] sm:$0xff]
  %v53 = vld [vmem:[%s1 + $0x8] sm:$0xff]
  %v54 = vld [vmem:[%s1 + $0x10] sm:$0xff]
  %v55 = vld [vmem:[%s1 + $0x18] sm:$0xff]
  %v56 = vld [vmem:[%s1 + $0x20] sm:$0xff]
  %v57 = vld [vmem:[%s1 + $0x28] sm:$0xff]
  %v58 = vld [vmem:[%s1 + $0x30] sm:$0xff]
  %v59 = vld [vmem:[%s1 + $0x38] sm:$0xff]
  %v60 = vld [vmem:[%s1 + $0x40] sm:$0xff]
  %v61 = vld [vmem:[%s1 + $0x48] sm:$0xff]
  %v62 = vld [vmem:[%s1 + $0x50] sm:$0xff]
  %v63 = vld [vmem:[%s1 + $0x58] sm:$0xff]
  %v64 = vld [vmem:[%s1 + $0x60] sm:$0xff]
  %v65 = vld [vmem:[%s1 + $0x68] sm:$0xff]
  %v66 = vld [vmem:[%s1 + $0x70] sm:$0xff]
  %v67 = vld [vmem:[%s1 + $0x78] sm:$0xff]
  %68 = vmatprep.subr.mxu0 0.0
  %69 = vmatpush1.msra.mxu0 %v67
  %70 = vmatprep.subr.mxu0 0.0
  %71 = vmatpush1.msra.mxu0 %v66
  %72 = vmatprep.subr.mxu0 0.0
  %73 = vmatpush1.msra.mxu0 %v65
  %74 = vmatprep.subr.mxu0 0.0
  %75 = vmatpush1.msra.mxu0 %v64
  %76 = vmatprep.subr.mxu0 0.0
  %77 = vmatpush1.msra.mxu0 %v63
  %78 = vmatprep.subr.mxu0 0.0
  %79 = vmatpush1.msra.mxu0 %v62
  %80 = vmatprep.subr.mxu0 0.0
  %81 = vmatpush1.msra.mxu0 %v61
  %82 = vmatprep.subr.mxu0 0.0
  %83 = vmatpush1.msra.mxu0 %v60
  %84 = vmatprep.subr.mxu0 0.0
  %85 = vmatpush1.msra.mxu0 %v59
  %86 = vmatprep.subr.mxu0 0.0
  %87 = vmatpush1.msra.mxu0 %v58
  %88 = vmatprep.subr.mxu0 0.0
  %89 = vmatpush1.msra.mxu0 %v57
  %90 = vmatprep.subr.mxu0 0.0
  %91 = vmatpush1.msra.mxu0 %v56
  %92 = vmatprep.subr.mxu0 0.0
  %93 = vmatpush1.msra.mxu0 %v55
  %94 = vmatprep.subr.mxu0 0.0
  %95 = vmatpush1.msra.mxu0 %v54
  %96 = vmatprep.subr.mxu0 0.0
  %97 = vmatpush1.msra.mxu0 %v53
  %98 = vmatprep.subr.mxu0 0.0
  %99 = vmatpush1.msra.mxu0 %v52
  %100 = vmatprep.subr.mxu0 0.0
  %101 = vmatpush2.msra.mxu0 0.0
  %102 = vmatprep.subr.mxu0 0.0
  %103 = vmatpush2.msra.mxu0 0.0
  %104 = vmatprep.subr.mxu0 0.0
  %105 = vmatpush2.msra.mxu0 0.0
  %106 = vmatprep.subr.mxu0 0.0
  %107 = vmatpush2.msra.mxu0 0.0
  %108 = vmatprep.subr.mxu0 0.0
  %109 = vmatpush2.msra.mxu0 0.0
  %110 = vmatprep.subr.mxu0 0.0
  %111 = vmatpush2.msra.mxu0 0.0
  %112 = vmatprep.subr.mxu0 0.0
  %113 = vmatpush2.msra.mxu0 0.0
  %114 = vmatprep.subr.mxu0 0.0
  %115 = vmatpush2.msra.mxu0 0.0
  %116 = vmatprep.subr.mxu0 0.0
  %117 = vmatpush2.msra.mxu0 0.0
  %118 = vmatprep.subr.mxu0 0.0
  %119 = vmatpush2.msra.mxu0 0.0
  %120 = vmatprep.subr.mxu0 0.0
  %121 = vmatpush2.msra.mxu0 0.0
  %122 = vmatprep.subr.mxu0 0.0
  %123 = vmatpush2.msra.mxu0 0.0
  %124 = vmatprep.subr.mxu0 0.0
  %125 = vmatpush2.msra.mxu0 0.0
  %126 = vmatprep.subr.mxu0 0.0
  %127 = vmatpush2.msra.mxu0 0.0
  %128 = vmatprep.subr.mxu0 0.0
  %129 = vmatpush2.msra.mxu0 0.0
  %130 = vmatprep.subr.mxu0 0.0
  %131 = vmatpush2.msra.mxu0 0.0
  %132 = vmatprep.mubr.f32.mxu0 0.0
  %133 = vmatmul.mubr.f32.gmra.mxu0 %v51
  %v134 = vpop.f32.mrf.mxu0
  %v135 = vadd.f32 0.0, %v134
  %v136 = vpop.f32.mrf.mxu0
  %137 = vdwg.mxu0
  %138 = vst [vmem:[%s2] sm:$0xff] %v135
  // Predicated region
  $region10: #{neural_arithmetic_forward.1} parent=0 // pred_check
    _
  $region11: #{neural_arithmetic_forward.1} parent=0 // pred_check_branch
    %140 = sbr.rel (0) target = $region13
  $region12: #{neural_arithmetic_forward.1} parent=0 // pred_region
    _
  $region13: #{neural_arithmetic_forward.1} parent=0 // pred_fallthru
    _
  // Predicated region
  $region14: #{neural_arithmetic_forward.1} parent=0 // pred_check
    _
  $region15: #{neural_arithmetic_forward.1} parent=0 // pred_check_branch
    %142 = sbr.rel (0) target = $region17
  $region16: #{neural_arithmetic_forward.1} parent=0 // pred_region
    _
  $region17: #{neural_arithmetic_forward.1} parent=0 // pred_fallthru
    _

</llo_original>
